<compile_context>
chip_gen: v7x
topology: tpu7x:2x2x1
jax: 0.10.0
libtpu: 0.0.40
codegen_flags: <defaults>
</compile_context>

<pallas_src>
import functools

import jax
import jax.numpy as jnp
from jax.experimental import pallas as pl
from jax.experimental.pallas import tpu as pltpu

EPS = 1e-5  # PyTorch BatchNorm2d default


def _round_up(x, m):
    return (x + m - 1) // m * m


def convblock_kernel(x_ref, w_ref, gamma_ref, beta_ref, o_ref,
                     sum_ref, sumsq_ref, scale_ref, shift_ref, *, inv_m):
    """Grid = (cout_tile, pass, m_tile).

    pass 0: conv matmul + exact per-channel sum / sum-of-squares (training-mode
            BN reduction over N,H,W), folded into one scale/shift pair at the
            last m_tile.
    pass 1: recompute the cheap (K <= few*128) matmul and apply a single fused
            multiply-add + ReLU.
    """
    p = pl.program_id(1)                 # 0 = stats pass, 1 = apply pass
    j = pl.program_id(2)                 # M-tile index
    last_j = pl.num_programs(2) - 1

    # Conv as one MXU matmul on the im2col tile.  Zero-padded K rows, Cout
    # columns and M rows contribute exactly zero.
    y = jnp.dot(x_ref[...], w_ref[...], preferred_element_type=jnp.float32)

    @pl.when(p == 0)
    def _stats_pass():
        @pl.when(j == 0)
        def _init():
            sum_ref[...] = jnp.zeros_like(sum_ref)
            sumsq_ref[...] = jnp.zeros_like(sumsq_ref)

        # Single-pass sum / sum-of-squares (var = E[y^2] - mean^2).  Padded M
        # rows are all-zero, so no mask is needed — only the true-M divisor.
        sum_ref[...] += jnp.sum(y, axis=0, keepdims=True)
        sumsq_ref[...] += jnp.sum(y * y, axis=0, keepdims=True)

        @pl.when(j == last_j)
        def _finalize():
            mean = sum_ref[...] * inv_m
            var = jnp.maximum(sumsq_ref[...] * inv_m - mean * mean, 0.0)
            inv = jax.lax.rsqrt(var + EPS)
            scale = gamma_ref[...] * inv
            scale_ref[...] = scale
            shift_ref[...] = beta_ref[...] - mean * scale
        # o_ref is intentionally untouched in pass 0; the output index_map pins
        # the block index during pass 0, so no stale data is written to HBM.

    @pl.when(p == 1)
    def _apply_pass():
        # Fused normalization (single FMA) + ReLU.
        o_ref[...] = jnp.maximum(y * scale_ref[...] + shift_ref[...], 0.0)


def conv_block(x, w, b, gamma, beta, stride, padding, *,
               tm=1024, tn=None, compute_dtype=jnp.bfloat16):
    """x: (N, Cin, H, W), w: (Cout, Cin, KH, KW) — PyTorch conventions.

    `b` (Conv2d bias) is accepted for interface parity but unused: it cancels
    exactly under training-mode BatchNorm.  `compute_dtype` sets the MXU
    operand dtype (bf16 default; pass jnp.float32 for a full-precision path —
    stats/output are f32 either way).  `tn` (multiple of 128) tiles Cout on a
    "parallel" grid axis; on v7x set tn = cout_pad // 2 to use both
    TensorCores.  Default tn=None keeps one Cout tile (no extra x streaming).
    """
    N, Cin, H, W = x.shape
    Cout, _, KH, KW = w.shape
    S, P = stride, padding
    OH = (H + 2 * P - KH) // S + 1
    OW = (W + 2 * P - KW) // S + 1
    del b  # no-op under training-mode BN: (y + b) - mean(y + b) == y - mean(y)

    M = N * OH * OW
    K = KH * KW * Cin

    # Lane-dense / MXU-aligned padded sizes.
    k_pad = _round_up(K, 128)
    cout_pad = _round_up(Cout, 128)
    if tn is None:
        tn = cout_pad
    tn = max(128, _round_up(tn, 128))
    if cout_pad % tn != 0:
        tn = cout_pad
    n_ct = cout_pad // tn

    # ---- VMEM budget / M-tile auto-fit ----
    isz = jnp.dtype(compute_dtype).itemsize
    try:  # ~128 MiB on v5e/v6e, 64 MiB on v7x
        vmem_cap = int(pltpu.get_tpu_info().vmem_capacity_bytes)
    except Exception:
        vmem_cap = 64 * 1024 * 1024
    budget = (vmem_cap * 3) // 4

    def tile_bytes(tm_):
        return (2 * tm_ * k_pad * isz          # double-buffered x tiles
                + 2 * tm_ * tn * 4             # double-buffered out tiles
                + 2 * k_pad * tn * isz         # weights (resident, dbl-buffered)
                + 2 * 2 * 2 * tn * 4           # gamma / beta
                + 4 * tn * 4 + (1 << 20))      # scratch + headroom
    # TODO(synk): single-buffer the resident weight/gamma/beta operands
    # (pipeline_mode=pl.Buffered(1)) to reclaim k_pad*tn*isz of VMEM for tm.

    tm = max(8, min(tm, _round_up(M, 8)))
    tm = _round_up(tm, 8)
    while tm > 8 and tile_bytes(tm) > budget:
        tm = max(8, _round_up(tm // 2, 8))
    m_pad = _round_up(M, tm)
    mt = m_pad // tm
    vmem_limit = int(min(max(tile_bytes(tm) + (4 << 20), 32 << 20), budget))

    # ---- glue: im2col patch extraction (NHWC), cast to bf16 BEFORE expansion ----
    # TODO(synk): fold the KH*KW window extraction into the kernel (halo DMA
    # from a padded-NHWC input via pl.ANY + make_async_copy) so the
    # KH*KW-expanded matrix is never materialized in HBM on bandwidth-bound
    # shapes; kept XLA-side here for arbitrary stride/padding robustness.
    x_nhwc = jnp.transpose(x, (0, 2, 3, 1)).astype(compute_dtype)
    x_sp = jnp.pad(x_nhwc, ((0, 0), (P, P), (P, P), (0, 0)))
    patches = []
    for kh in range(KH):
        for kw in range(KW):
            patches.append(x_sp[:, kh:kh + S * OH:S, kw:kw + S * OW:S, :])
    patches = jnp.stack(patches, axis=3)          # (N, OH, OW, KH*KW, Cin)
    x_mat = patches.reshape(M, K)

    # Zero-pad to aligned shapes (padding is inert in matmul and BN sums).
    x_mat = jnp.pad(x_mat, ((0, m_pad - M), (0, k_pad - K)))
    w_mat = jnp.transpose(w, (2, 3, 1, 0)).reshape(K, Cout).astype(compute_dtype)
    w_mat = jnp.pad(w_mat, ((0, k_pad - K), (0, cout_pad - Cout)))
    g_row = jnp.pad(gamma.reshape(1, Cout).astype(jnp.float32),
                    ((0, 0), (0, cout_pad - Cout)))
    be_row = jnp.pad(beta.reshape(1, Cout).astype(jnp.float32),
                     ((0, 0), (0, cout_pad - Cout)))

    kernel = functools.partial(convblock_kernel, inv_m=1.0 / float(M))

    cost = pl.CostEstimate(
        flops=2 * 2 * m_pad * k_pad * cout_pad,                 # two matmul passes
        bytes_accessed=(2 * n_ct * m_pad * k_pad * isz          # x read both passes
                        + k_pad * cout_pad * isz                # weights
                        + m_pad * cout_pad * 4                  # output write
                        + 4 * cout_pad * 4),
        transcendentals=0)

    out = pl.pallas_call(
        kernel,
        out_shape=jax.ShapeDtypeStruct((m_pad, cout_pad), jnp.float32),
        grid_spec=pltpu.PrefetchScalarGridSpec(
            num_scalar_prefetch=0,
            grid=(n_ct, 2, mt),                  # (cout_tile, pass, m_tile)
            in_specs=[
                pl.BlockSpec((tm, k_pad), lambda c, p, j: (j, 0)),   # x tiles
                pl.BlockSpec((k_pad, tn), lambda c, p, j: (0, c)),   # weights
                pl.BlockSpec((1, tn), lambda c, p, j: (0, c)),       # gamma
                pl.BlockSpec((1, tn), lambda c, p, j: (0, c)),       # beta
            ],
            # Pin the output block index during pass 0 (p == 0) so untouched
            # blocks are never written back; pass 1 visits (j, c) normally and
            # each block is DMA'd to HBM exactly once with final values.
            out_specs=pl.BlockSpec((tm, tn), lambda c, p, j: (p * j, c)),
            scratch_shapes=[
                pltpu.VMEM((1, tn), jnp.float32),   # per-channel sum
                pltpu.VMEM((1, tn), jnp.float32),   # per-channel sum of squares
                pltpu.VMEM((1, tn), jnp.float32),   # fused BN scale
                pltpu.VMEM((1, tn), jnp.float32),   # fused BN shift
            ],
        ),
        compiler_params=pltpu.CompilerParams(
            # Cout tiles are fully independent (own BN stats) -> "parallel"
            # (v7x dual-TC); the shared BN accumulator and the pass->apply
            # dependency keep the (pass, m_tile) axes "arbitrary".
            dimension_semantics=("parallel", "arbitrary", "arbitrary"),
            vmem_limit_bytes=vmem_limit,
        ),
        cost_estimate=cost,
    )(x_mat, w_mat, g_row, be_row)

    # ---- glue: strip padding, back to NCHW ----
    out = out[:M, :Cout].reshape(N, OH, OW, Cout)
    return jnp.transpose(out, (0, 3, 1, 2))


def reference(x, w, b, gamma, beta, stride, padding):
    """Pure-JAX reference (Conv2d + training-mode BatchNorm2d + ReLU)."""
    y = jax.lax.conv_general_dilated(
        x, w, window_strides=(stride, stride),
        padding=[(padding, padding), (padding, padding)],
        dimension_numbers=("NCHW", "OIHW", "NCHW"))
    y = y + b.reshape(1, -1, 1, 1)
    mean = jnp.mean(y, axis=(0, 2, 3), keepdims=True)
    var = jnp.mean((y - mean) ** 2, axis=(0, 2, 3), keepdims=True)
    yn = gamma.reshape(1, -1, 1, 1) * (y - mean) * jax.lax.rsqrt(var + EPS) \
        + beta.reshape(1, -1, 1, 1)
    return jnp.maximum(yn, 0.0)


if __name__ == "__main__":
    # ConvBlock(in_channels=4, out_channels=8, kernel_size=3, stride=1, padding=1)
    N, Cin, H, W = 2, 4, 16, 16
    Cout, KH, KW = 8, 3, 3
    stride, padding = 1, 1

    key = jax.random.PRNGKey(0)
    kx, kw, kb = jax.random.split(key, 3)
    x = jax.random.normal(kx, (N, Cin, H, W), dtype=jnp.float32)
    fan_in = Cin * KH * KW
    bound = 1.0 / (fan_in ** 0.5)
    w = jax.random.uniform(kw, (Cout, Cin, KH, KW), jnp.float32, -bound, bound)
    b = jax.random.uniform(kb, (Cout,), jnp.float32, -bound, bound)
    gamma = jnp.ones((Cout,), jnp.float32)   # PyTorch BN default init
    beta = jnp.zeros((Cout,), jnp.float32)

    ref = jax.block_until_ready(reference(x, w, b, gamma, beta, stride, padding))

    # tm=128 so the toy M=512 exercises the multi-tile two-pass BN path
    # (default tm=1024 for realistic shapes).
    out_bf16 = jax.block_until_ready(
        conv_block(x, w, b, gamma, beta, stride, padding, tm=128))
    assert out_bf16.shape == (N, Cout, H, W), out_bf16.shape
    assert jnp.allclose(out_bf16, ref, atol=5e-2, rtol=5e-2), \
        "bf16 kernel mismatch vs reference"

    out_f32 = jax.block_until_ready(
        conv_block(x, w, b, gamma, beta, stride, padding, tm=128,
                   compute_dtype=jnp.float32))
    assert jnp.allclose(out_f32, ref, atol=1e-4, rtol=1e-4), \
        "f32 kernel mismatch vs reference"

    print("KERNEL_OK")
</pallas_src>

<mosaic_0001>
module attributes {stable_mosaic.version = 11 : i64} {
  func.func @convblock_kernel(%arg0: i32, %arg1: i32, %arg2: i32, %arg3: memref<128x128xbf16, #tpu.memory_space<vmem>>, %arg4: memref<128x128xbf16, #tpu.memory_space<vmem>>, %arg5: memref<1x128xf32, #tpu.memory_space<vmem>>, %arg6: memref<1x128xf32, #tpu.memory_space<vmem>>, %arg7: memref<128x128xf32, #tpu.memory_space<vmem>>, %arg8: memref<1x128xf32, #tpu.memory_space<vmem>>, %arg9: memref<1x128xf32, #tpu.memory_space<vmem>>, %arg10: memref<1x128xf32, #tpu.memory_space<vmem>>, %arg11: memref<1x128xf32, #tpu.memory_space<vmem>>) attributes {dimension_semantics = [#tpu.dimension_semantics<parallel>, #tpu.dimension_semantics<arbitrary>, #tpu.dimension_semantics<arbitrary>], iteration_bounds = array<i64: 1, 2, 4>, scalar_prefetch = 0 : i64, scratch_operands = 4 : i64, tpu.core_type = #tpu.core_type<tc>, window_params = [{transform_indices = @transform_0, window_bounds = array<i64: 128, 128>}, {transform_indices = @transform_1, window_bounds = array<i64: 128, 128>}, {transform_indices = @transform_2, window_bounds = array<i64: 1, 128>}, {transform_indices = @transform_3, window_bounds = array<i64: 1, 128>}, {transform_indices = @transform_4, window_bounds = array<i64: 128, 128>}]} {
    %c0 = arith.constant 0 : index
    %c0_0 = arith.constant 0 : index
    %0 = vector.load %arg3[%c0, %c0_0] : memref<128x128xbf16, #tpu.memory_space<vmem>>, vector<128x128xbf16>
    %c0_1 = arith.constant 0 : index
    %c0_2 = arith.constant 0 : index
    %1 = vector.load %arg4[%c0_1, %c0_2] : memref<128x128xbf16, #tpu.memory_space<vmem>>, vector<128x128xbf16>
    %cst = arith.constant dense<0.000000e+00> : vector<128x128xf32>
    %2 = tpu.matmul %0, %1, %cst {dimension_numbers = #tpu.dot_dimension_numbers<[1], [0], [0], [1], [0, 0, 1, 1], [], []>} : vector<128x128xbf16>, vector<128x128xbf16>, vector<128x128xf32> -> vector<128x128xf32>
    %c0_i32 = arith.constant 0 : i32
    %3 = arith.cmpi eq, %arg1, %c0_i32 : i32
    %4 = arith.extui %3 : i1 to i32
    %c0_i32_3 = arith.constant 0 : i32
    %5 = arith.cmpi ne, %4, %c0_i32_3 : i32
    scf.if %5 {
      %c0_i32_5 = arith.constant 0 : i32
      %9 = arith.cmpi eq, %arg2, %c0_i32_5 : i32
      %10 = arith.extui %9 : i1 to i32
      %c0_i32_6 = arith.constant 0 : i32
      %11 = arith.cmpi ne, %10, %c0_i32_6 : i32
      scf.if %11 {
        %cst_18 = arith.constant 0.000000e+00 : f32
        %26 = vector.broadcast %cst_18 : f32 to vector<1x128xf32>
        %c0_19 = arith.constant 0 : index
        %c0_20 = arith.constant 0 : index
        %27 = vector.load %arg8[%c0_19, %c0_20] : memref<1x128xf32, #tpu.memory_space<vmem>>, vector<1x128xf32>
        tpu.vector_store %arg8[%c0_19, %c0_20], %26 {strides = array<i32>} : memref<1x128xf32, #tpu.memory_space<vmem>>, vector<1x128xf32>,
        %cst_21 = arith.constant 0.000000e+00 : f32
        %28 = vector.broadcast %cst_21 : f32 to vector<1x128xf32>
        %c0_22 = arith.constant 0 : index
        %c0_23 = arith.constant 0 : index
        %29 = vector.load %arg9[%c0_22, %c0_23] : memref<1x128xf32, #tpu.memory_space<vmem>>, vector<1x128xf32>
        tpu.vector_store %arg9[%c0_22, %c0_23], %28 {strides = array<i32>} : memref<1x128xf32, #tpu.memory_space<vmem>>, vector<1x128xf32>,
      } else {
      }
      %c0_7 = arith.constant 0 : index
      %c0_8 = arith.constant 0 : index
      %12 = vector.load %arg8[%c0_7, %c0_8] : memref<1x128xf32, #tpu.memory_space<vmem>>, vector<1x128xf32>
      %cst_9 = arith.constant dense<0.000000e+00> : vector<128xf32>
      %13 = vector.multi_reduction <add>, %2, %cst_9 [0] : vector<128x128xf32> to vector<128xf32>
      %14 = vector.shape_cast %13 : vector<128xf32> to vector<1x128xf32>
      %15 = arith.addf %12, %14 : vector<1x128xf32>
      %c0_10 = arith.constant 0 : index
      %c0_11 = arith.constant 0 : index
      %16 = vector.load %arg8[%c0_10, %c0_11] : memref<1x128xf32, #tpu.memory_space<vmem>>, vector<1x128xf32>
      tpu.vector_store %arg8[%c0_10, %c0_11], %15 {strides = array<i32>} : memref<1x128xf32, #tpu.memory_space<vmem>>, vector<1x128xf32>,
      %c0_12 = arith.constant 0 : index
      %c0_13 = arith.constant 0 : index
      %17 = vector.load %arg9[%c0_12, %c0_13] : memref<1x128xf32, #tpu.memory_space<vmem>>, vector<1x128xf32>
      %18 = arith.mulf %2, %2 : vector<128x128xf32>
      %cst_14 = arith.constant dense<0.000000e+00> : vector<128xf32>
      %19 = vector.multi_reduction <add>, %18, %cst_14 [0] : vector<128x128xf32> to vector<128xf32>
      %20 = vector.shape_cast %19 : vector<128xf32> to vector<1x128xf32>
      %21 = arith.addf %17, %20 : vector<1x128xf32>
      %c0_15 = arith.constant 0 : index
      %c0_16 = arith.constant 0 : index
      %22 = vector.load %arg9[%c0_15, %c0_16] : memref<1x128xf32, #tpu.memory_space<vmem>>, vector<1x128xf32>
      tpu.vector_store %arg9[%c0_15, %c0_16], %21 {strides = array<i32>} : memref<1x128xf32, #tpu.memory_space<vmem>>, vector<1x128xf32>,
      %c3_i32 = arith.constant 3 : i32
      %23 = arith.cmpi eq, %arg2, %c3_i32 : i32
      %24 = arith.extui %23 : i1 to i32
      %c0_i32_17 = arith.constant 0 : i32
      %25 = arith.cmpi ne, %24, %c0_i32_17 : i32
      scf.if %25 {
        %c0_18 = arith.constant 0 : index
        %c0_19 = arith.constant 0 : index
        %26 = vector.load %arg8[%c0_18, %c0_19] : memref<1x128xf32, #tpu.memory_space<vmem>>, vector<1x128xf32>
        %cst_20 = arith.constant 0.001953125 : f32
        %27 = vector.broadcast %cst_20 : f32 to vector<1x128xf32>
        %28 = arith.mulf %26, %27 : vector<1x128xf32>
        %c0_21 = arith.constant 0 : index
        %c0_22 = arith.constant 0 : index
        %29 = vector.load %arg9[%c0_21, %c0_22] : memref<1x128xf32, #tpu.memory_space<vmem>>, vector<1x128xf32>
        %cst_23 = arith.constant 0.001953125 : f32
        %30 = vector.broadcast %cst_23 : f32 to vector<1x128xf32>
        %31 = arith.mulf %29, %30 : vector<1x128xf32>
        %32 = arith.mulf %28, %28 : vector<1x128xf32>
        %33 = arith.subf %31, %32 : vector<1x128xf32>
        %cst_24 = arith.constant 0.000000e+00 : f32
        %34 = vector.broadcast %cst_24 : f32 to vector<1x128xf32>
        %35 = arith.maximumf %33, %34 : vector<1x128xf32>
        %cst_25 = arith.constant 9.99999974E-6 : f32
        %36 = vector.broadcast %cst_25 : f32 to vector<1x128xf32>
        %37 = arith.addf %35, %36 : vector<1x128xf32>
        %38 = math.rsqrt %37 : vector<1x128xf32>
        %c0_26 = arith.constant 0 : index
        %c0_27 = arith.constant 0 : index
        %39 = vector.load %arg5[%c0_26, %c0_27] : memref<1x128xf32, #tpu.memory_space<vmem>>, vector<1x128xf32>
        %40 = arith.mulf %39, %38 : vector<1x128xf32>
        %c0_28 = arith.constant 0 : index
        %c0_29 = arith.constant 0 : index
        %41 = vector.load %arg10[%c0_28, %c0_29] : memref<1x128xf32, #tpu.memory_space<vmem>>, vector<1x128xf32>
        tpu.vector_store %arg10[%c0_28, %c0_29], %40 {strides = array<i32>} : memref<1x128xf32, #tpu.memory_space<vmem>>, vector<1x128xf32>,
        %c0_30 = arith.constant 0 : index
        %c0_31 = arith.constant 0 : index
        %42 = vector.load %arg6[%c0_30, %c0_31] : memref<1x128xf32, #tpu.memory_space<vmem>>, vector<1x128xf32>
        %43 = arith.mulf %28, %40 : vector<1x128xf32>
        %44 = arith.subf %42, %43 : vector<1x128xf32>
        %c0_32 = arith.constant 0 : index
        %c0_33 = arith.constant 0 : index
        %45 = vector.load %arg11[%c0_32, %c0_33] : memref<1x128xf32, #tpu.memory_space<vmem>>, vector<1x128xf32>
        tpu.vector_store %arg11[%c0_32, %c0_33], %44 {strides = array<i32>} : memref<1x128xf32, #tpu.memory_space<vmem>>, vector<1x128xf32>,
      } else {
      }
    } else {
    }
    %c1_i32 = arith.constant 1 : i32
    %6 = arith.cmpi eq, %arg1, %c1_i32 : i32
    %7 = arith.extui %6 : i1 to i32
    %c0_i32_4 = arith.constant 0 : i32
    %8 = arith.cmpi ne, %7, %c0_i32_4 : i32
    scf.if %8 {
      %c0_5 = arith.constant 0 : index
      %c0_6 = arith.constant 0 : index
      %9 = vector.load %arg10[%c0_5, %c0_6] : memref<1x128xf32, #tpu.memory_space<vmem>>, vector<1x128xf32>
      %10 = vector.broadcast %9 : vector<1x128xf32> to vector<128x128xf32>
      %11 = arith.mulf %2, %10 : vector<128x128xf32>
      %c0_7 = arith.constant 0 : index
      %c0_8 = arith.constant 0 : index
      %12 = vector.load %arg11[%c0_7, %c0_8] : memref<1x128xf32, #tpu.memory_space<vmem>>, vector<1x128xf32>
      %13 = vector.broadcast %12 : vector<1x128xf32> to vector<128x128xf32>
      %14 = arith.addf %11, %13 : vector<128x128xf32>
      %cst_9 = arith.constant 0.000000e+00 : f32
      %15 = vector.broadcast %cst_9 : f32 to vector<128x128xf32>
      %16 = arith.maximumf %14, %15 : vector<128x128xf32>
      %c0_10 = arith.constant 0 : index
      %c0_11 = arith.constant 0 : index
      %17 = vector.load %arg7[%c0_10, %c0_11] : memref<128x128xf32, #tpu.memory_space<vmem>>, vector<128x128xf32>
      tpu.vector_store %arg7[%c0_10, %c0_11], %16 {strides = array<i32>} : memref<128x128xf32, #tpu.memory_space<vmem>>, vector<128x128xf32>,
    } else {
    }
    return
  }
  func.func @transform_0(%arg0: i32, %arg1: i32, %arg2: i32) -> (i32, i32) {
    %c0_i32 = arith.constant 0 : i32
    %c0_i32_0 = arith.constant 0 : i32
    return %arg2, %c0_i32 : i32, i32
  }
  func.func @transform_1(%arg0: i32, %arg1: i32, %arg2: i32) -> (i32, i32) {
    %c0_i32 = arith.constant 0 : i32
    %c0_i32_0 = arith.constant 0 : i32
    return %c0_i32, %arg0 : i32, i32
  }
  func.func @transform_2(%arg0: i32, %arg1: i32, %arg2: i32) -> (i32, i32) {
    %c0_i32 = arith.constant 0 : i32
    %c0_i32_0 = arith.constant 0 : i32
    return %c0_i32, %arg0 : i32, i32
  }
  func.func @transform_3(%arg0: i32, %arg1: i32, %arg2: i32) -> (i32, i32) {
    %c0_i32 = arith.constant 0 : i32
    %c0_i32_0 = arith.constant 0 : i32
    return %c0_i32, %arg0 : i32, i32
  }
  func.func @transform_4(%arg0: i32, %arg1: i32, %arg2: i32) -> (i32, i32) {
    %0 = arith.muli %arg1, %arg2 : i32
    %c0_i32 = arith.constant 0 : i32
    return %0, %arg0 : i32, i32
  }
}

</mosaic_0001>

<llo_original>
// kernel: tpu_custom_call.1
$region0: #{tpu_custom_call.1}
  #allocation0 [shape = 'u32[]', space=smem, size = 0x4, offset = 0x4, fixed_abs, tag = 'smem constant byte address 0x4 - core index']
  #allocation1 [shape = 'u32[144,128]{1,0:T(1,128)}', space=vmem, size = 0x12000, scoped, tag = 'internal scratch']
  #allocation2 [shape = 'f32[1,128]{1,0:T(1,128)}', space=vmem, size = 0x200, scoped, tag = 'scratch operand']
  #allocation3 [shape = 'f32[1,128]{1,0:T(1,128)}', space=vmem, size = 0x200, scoped, tag = 'scratch operand']
  #allocation4 [shape = 'f32[1,128]{1,0:T(1,128)}', space=vmem, size = 0x200, scoped, tag = 'scratch operand']
  #allocation5 [shape = 'f32[1,128]{1,0:T(1,128)}', space=vmem, size = 0x200, scoped, tag = 'scratch operand']
  %s0 = inlined_call_operand.hbm [shape: bf16[512,128], index: 0, kind: input, shape index: {}]
  %s1 = inlined_call_operand.hbm [shape: bf16[128,128], index: 1, kind: input, shape index: {}]
  %s2 = inlined_call_operand.vmem [shape: f32[1,128], index: 2, kind: input, shape index: {}]
  %s3 = inlined_call_operand.vmem [shape: f32[1,128], index: 3, kind: input, shape index: {}]
  %s4 = inlined_call_operand.hbm [shape: f32[512,128], index: 4, kind: output, shape index: {}]
  %s5 = sld [smem:[#allocation0]]
  $region73: #{tpu_custom_call.1} parent=0
    _
  %s7 = ssub.s32 1, %s5
  %s8 = scalar_select 0, %s7, %s5
  $region1: #{tpu_custom_call.1} parent=0
    #allocation6 [shape = 'u8[65536]{0}', space=vmem, size = 0x10000, scoped, tag = 'input window, operand 0']
    #allocation7 [shape = 's32[2]{0}', space=sflag, size = 0x8, scoped, tag = 'scoped memory for tpu_custom_call.1']
    #allocation8 [shape = 's32[2]{0}', space=sflag, size = 0x8, scoped, tag = 'scoped memory for tpu_custom_call.1']
    #allocation9 [shape = 'u8[32768]{0}', space=vmem, size = 0x8000, scoped, tag = 'input window, operand 1, single buffered']
    #allocation10 [shape = 's32[1]{0}', space=sflag, size = 0x4, scoped, tag = 'scoped memory for tpu_custom_call.1']
    #allocation11 [shape = 'u8[131072]{0}', space=vmem, size = 0x20000, scoped, tag = 'output window, operand 0']
    %9 = vsyncpa [#allocation7], 0
    %s10 = scalar_lea.sflag [#allocation7], 1
    %11 = vsyncpa %s10, 0
    %12 = vsyncpa [#allocation10], 0
    %13 = vsyncpa [#allocation8], 0
    %s14 = scalar_lea.sflag [#allocation8], 1
    %15 = vsyncpa %s14, 0
    loop: start=0, step=1, limit=10
    $region2: #{tpu_custom_call.1} parent=1 // loop_pre_header
      _
    $region3: #{tpu_custom_call.1} parent=1 // loop_header
      %s17 = sphi 0, %s21
      %p18 = scmp.ge.s32.totalorder %s17, 10
      %s24 = sphi 0, %s43
      %s25 = sphi 0, %s39
      %s26 = sphi 0, %s35
      %s27 = sphi 0, %s24
      %s28 = sphi 0, %s25
      %s29 = sphi 0, %s26
      %s30 = sphi 0, %s27
      %s31 = sphi 0, %s28
      %s32 = sphi 0, %s29
      %s46 = sphi 0, %s48
      %s49 = sphi 0, %s46
      %s50 = sphi 0, %s49
      %s66 = sphi 0, %s50
      %s72 = sphi 0, %s74
      %s75 = sphi 0, %s72
      %s76 = sphi 0, %s75
      %s92 = sphi 0, %s76
      %s98 = sphi 0, %s100
      %s101 = sphi 0, %s98
      %s102 = sphi 0, %s101
      %s118 = sphi 0, %s102
      %s124 = sphi 0, %s126
      %s127 = sphi 0, %s124
      %s128 = sphi 0, %s127
      %s144 = sphi 0, %s128
      %s154 = sphi 0, %s156
      %s157 = sphi 0, %s154
      %s158 = sphi 0, %s157
      %s174 = sphi 0, %s158
    $region4: #{tpu_custom_call.1} parent=1 // loop_header_branch
      %20 = sbr.rel (%p18) target = $region8
    $region5: #{tpu_custom_call.1} parent=1 // loop_body
      %s22 = ssub.s32 %s17, 1
      %s23 = ssub.s32 %s17, 2
      %s33 = sadd.s32 1, %s26
      %p34 = scmp.ge.s32.totalorder %s33, 4
      %s35 = scalar_select %p34, 0, %s33
      %s36 = sadd.s32 1, %s25
      %s37 = scalar_select %p34, %s36, %s25
      %p38 = scmp.ge.s32.totalorder %s37, 2
      %s39 = scalar_select %p38, 0, %s37
      %s40 = sadd.s32 1, %s24
      %s41 = scalar_select %p38, %s40, %s24
      %p42 = scmp.ge.s32.totalorder %s41, 1
      %s43 = scalar_select %p42, 0, %s41
      %s44 = ssub.s32 %s26, %s35
      %p45 = scmp.eq.s32.totalorder %s44, 0
      %s47 = sadd.s32 %s46, 1
      %s48 = scalar_select %p45, %s46, %s47
      %p51 = pneg %p45
      %p52 = scmp.eq.s32.totalorder %s17, 7
      %p53 = por %p51, %p52
      %p54 = scmp.ne.s32.totalorder %s46, %s49
      %p55 = scmp.eq.s32.totalorder %s17, 0
      %p56 = por %p54, %p55
      %p57 = scmp.ne.s32.totalorder %s46, %s49
      %p58 = scmp.eq.s32.totalorder %s22, 7
      %p59 = por %p57, %p58
      %p60 = scmp.ne.s32.totalorder %s49, %s50
      %p61 = scmp.eq.s32.totalorder %s22, 0
      %p62 = por %p60, %p61
      %p63 = scmp.ne.s32.totalorder %s49, %s50
      %p64 = scmp.eq.s32.totalorder %s23, 7
      %p65 = por %p63, %p64
      %p67 = scmp.ne.s32.totalorder %s50, %s66
      %p68 = scmp.eq.s32.totalorder %s23, 0
      %p69 = por %p67, %p68
      %s70 = ssub.s32 %s24, %s43
      %p71 = scmp.eq.s32.totalorder %s70, 0
      %s73 = sadd.s32 %s72, 1
      %s74 = scalar_select %p71, %s72, %s73
      %p77 = pneg %p71
      %p78 = scmp.eq.s32.totalorder %s17, 7
      %p79 = por %p77, %p78
      %p80 = scmp.ne.s32.totalorder %s72, %s75
      %p81 = scmp.eq.s32.totalorder %s17, 0
      %p82 = por %p80, %p81
      %p83 = scmp.ne.s32.totalorder %s72, %s75
      %p84 = scmp.eq.s32.totalorder %s22, 7
      %p85 = por %p83, %p84
      %p86 = scmp.ne.s32.totalorder %s75, %s76
      %p87 = scmp.eq.s32.totalorder %s22, 0
      %p88 = por %p86, %p87
      %p89 = scmp.ne.s32.totalorder %s75, %s76
      %p90 = scmp.eq.s32.totalorder %s23, 7
      %p91 = por %p89, %p90
      %p93 = scmp.ne.s32.totalorder %s76, %s92
      %p94 = scmp.eq.s32.totalorder %s23, 0
      %p95 = por %p93, %p94
      %s96 = ssub.s32 %s24, %s43
      %p97 = scmp.eq.s32.totalorder %s96, 0
      %s99 = sadd.s32 %s98, 1
      %s100 = scalar_select %p97, %s98, %s99
      %p103 = pneg %p97
      %p104 = scmp.eq.s32.totalorder %s17, 7
      %p105 = por %p103, %p104
      %p106 = scmp.ne.s32.totalorder %s98, %s101
      %p107 = scmp.eq.s32.totalorder %s17, 0
      %p108 = por %p106, %p107
      %p109 = scmp.ne.s32.totalorder %s98, %s101
      %p110 = scmp.eq.s32.totalorder %s22, 7
      %p111 = por %p109, %p110
      %p112 = scmp.ne.s32.totalorder %s101, %s102
      %p113 = scmp.eq.s32.totalorder %s22, 0
      %p114 = por %p112, %p113
      %p115 = scmp.ne.s32.totalorder %s101, %s102
      %p116 = scmp.eq.s32.totalorder %s23, 7
      %p117 = por %p115, %p116
      %p119 = scmp.ne.s32.totalorder %s102, %s118
      %p120 = scmp.eq.s32.totalorder %s23, 0
      %p121 = por %p119, %p120
      %s122 = ssub.s32 %s24, %s43
      %p123 = scmp.eq.s32.totalorder %s122, 0
      %s125 = sadd.s32 %s124, 1
      %s126 = scalar_select %p123, %s124, %s125
      %p129 = pneg %p123
      %p130 = scmp.eq.s32.totalorder %s17, 7
      %p131 = por %p129, %p130
      %p132 = scmp.ne.s32.totalorder %s124, %s127
      %p133 = scmp.eq.s32.totalorder %s17, 0
      %p134 = por %p132, %p133
      %p135 = scmp.ne.s32.totalorder %s124, %s127
      %p136 = scmp.eq.s32.totalorder %s22, 7
      %p137 = por %p135, %p136
      %p138 = scmp.ne.s32.totalorder %s127, %s128
      %p139 = scmp.eq.s32.totalorder %s22, 0
      %p140 = por %p138, %p139
      %p141 = scmp.ne.s32.totalorder %s127, %s128
      %p142 = scmp.eq.s32.totalorder %s23, 7
      %p143 = por %p141, %p142
      %p145 = scmp.ne.s32.totalorder %s128, %s144
      %p146 = scmp.eq.s32.totalorder %s23, 0
      %p147 = por %p145, %p146
      %s148 = smul.u32 %s25, %s26
      %s149 = smul.u32 %s39, %s35
      %s150 = ssub.s32 %s148, %s149
      %s151 = ssub.s32 %s24, %s43
      %s152 = sor.u32 %s150, %s151
      %p153 = scmp.eq.s32.totalorder %s152, 0
      %s155 = sadd.s32 %s154, 1
      %s156 = scalar_select %p153, %s154, %s155
      %p159 = pneg %p153
      %p160 = scmp.eq.s32.totalorder %s17, 7
      %p161 = por %p159, %p160
      %p162 = scmp.ne.s32.totalorder %s154, %s157
      %p163 = scmp.eq.s32.totalorder %s17, 0
      %p164 = por %p162, %p163
      %p165 = scmp.ne.s32.totalorder %s154, %s157
      %p166 = scmp.eq.s32.totalorder %s22, 7
      %p167 = por %p165, %p166
      %p168 = scmp.ne.s32.totalorder %s157, %s158
      %p169 = scmp.eq.s32.totalorder %s22, 0
      %p170 = por %p168, %p169
      %p171 = scmp.ne.s32.totalorder %s157, %s158
      %p172 = scmp.eq.s32.totalorder %s23, 7
      %p173 = por %p171, %p172
      %p175 = scmp.ne.s32.totalorder %s158, %s174
      %p176 = scmp.eq.s32.totalorder %s23, 0
      %p177 = por %p175, %p176
      %p178 = scmp.le.s32.totalorder 1, %s17
      %p179 = scmp.lt.s32.totalorder %s17, 9
      %p180 = pnand %p178, %p179
      %p181 = pneg %p180
      // Predicated region
      $region9: #{tpu_custom_call.1} parent=5 // pred_check
        _
      $region10: #{tpu_custom_call.1} parent=5 // pred_check_branch
        %183 = sbr.rel (%p180) target = $region12
      $region11: #{tpu_custom_call.1} parent=5 // pred_region
        %s184 = ssub.s32 %s17, 1
        // Predicated region
        $region13: #{tpu_custom_call.1} parent=11 // pred_check
          %p185 = pneg %p88
        $region14: #{tpu_custom_call.1} parent=11 // pred_check_branch
          %187 = sbr.rel (%p185) target = $region16
        $region15: #{tpu_custom_call.1} parent=11 // pred_region
          %s189 = ssub.s32 1024, 1024
          %190 = vsyncadd [#allocation10], %s189
          %s191 = smul.addr %s27, 64
          %s192 = scalar_lea.hbm %s1, %s191
          %s193 = sshll.u32 [#allocation9], 4
          %s194 = int_to_ptr.vmem [resolvable:$true] %s193
          %199 = dma.hbm_to_vmem [thread:$0]  %s192, 1024, %s194, [#allocation10], 64, 64, 4
        $region16: #{tpu_custom_call.1} parent=11 // pred_fallthru
          _
        // Predicated region
        $region17: #{tpu_custom_call.1} parent=11 // pred_check
          %p200 = pneg %p114
        $region18: #{tpu_custom_call.1} parent=11 // pred_check_branch
          %202 = sbr.rel (%p200) target = $region20
        $region19: #{tpu_custom_call.1} parent=11 // pred_region
          %p203 = scmp.lt.s32.totalorder %s27, 0
          %s204 = scalar_select %p203, %s27, 0
          %s205 = scalar_lea.vmem %s2, %s204
        $region20: #{tpu_custom_call.1} parent=11 // pred_fallthru
          _
        // Predicated region
        $region21: #{tpu_custom_call.1} parent=11 // pred_check
          %p206 = pneg %p140
        $region22: #{tpu_custom_call.1} parent=11 // pred_check_branch
          %208 = sbr.rel (%p206) target = $region24
        $region23: #{tpu_custom_call.1} parent=11 // pred_region
          %p209 = scmp.lt.s32.totalorder %s27, 0
          %s210 = scalar_select %p209, %s27, 0
          %s211 = scalar_lea.vmem %s3, %s210
        $region24: #{tpu_custom_call.1} parent=11 // pred_fallthru
          _
      $region12: #{tpu_custom_call.1} parent=5 // pred_fallthru
        _
      %p212 = scmp.lt.s32.totalorder %s17, 8
      // Predicated region
      $region25: #{tpu_custom_call.1} parent=5 // pred_check
        %p213 = pneg %p212
      $region26: #{tpu_custom_call.1} parent=5 // pred_check_branch
        %215 = sbr.rel (%p213) target = $region28
      $region27: #{tpu_custom_call.1} parent=5 // pred_region
        // Predicated region
        $region29: #{tpu_custom_call.1} parent=27 // pred_check
          %p216 = pneg %p56
        $region30: #{tpu_custom_call.1} parent=27 // pred_check_branch
          %218 = sbr.rel (%p216) target = $region32
        $region31: #{tpu_custom_call.1} parent=27 // pred_region
          %s219 = sand.u32 %s46, 1
          %s220 = scalar_lea.sflag [#allocation7], %s219
          %s221 = sand.u32 %s46, 1
          %s222 = smul.addr %s221, 64
          %s223 = scalar_lea.vmem [#allocation6], %s222
          %s224 = smul.u32 16, %s26
          %s226 = ssub.s32 1024, 1024
          %227 = vsyncadd %s220, %s226
          %s228 = smul.addr %s224, 64
          %s229 = scalar_lea.hbm %s0, %s228
          %s230 = sshll.u32 %s223, 4
          %s231 = int_to_ptr.vmem [resolvable:$true] %s230
          %236 = dma.hbm_to_vmem [thread:$0]  %s229, 1024, %s231, %s220, 64, 64, 4
        $region32: #{tpu_custom_call.1} parent=27 // pred_fallthru
          _
      $region28: #{tpu_custom_call.1} parent=5 // pred_fallthru
        _
      %p237 = scmp.le.s32.totalorder 1, %s17
      %p238 = scmp.lt.s32.totalorder %s17, 9
      %p239 = pnand %p237, %p238
      %p240 = pneg %p239
      // Predicated region
      $region33: #{tpu_custom_call.1} parent=5 // pred_check
        _
      $region34: #{tpu_custom_call.1} parent=5 // pred_check_branch
        %242 = sbr.rel (%p239) target = $region36
      $region35: #{tpu_custom_call.1} parent=5 // pred_region
        %s243 = ssub.s32 %s17, 1
        %s244 = sand.u32 %s49, 1
        %s245 = scalar_lea.sflag [#allocation7], %s244
        %s246 = sand.u32 %s49, 1
        %s247 = smul.addr %s246, 64
        %s248 = scalar_lea.vmem [#allocation6], %s247
        // Predicated region
        $region37: #{tpu_custom_call.1} parent=35 // pred_check
          %p249 = pneg %p62
        $region38: #{tpu_custom_call.1} parent=35 // pred_check_branch
          %251 = sbr.rel (%p249) target = $region40
        $region39: #{tpu_custom_call.1} parent=35 // pred_region
          %252 = dma.done %s245, 1024
        $region40: #{tpu_custom_call.1} parent=35 // pred_fallthru
          _
        // Predicated region
        $region41: #{tpu_custom_call.1} parent=35 // pred_check
          %p253 = pneg %p88
        $region42: #{tpu_custom_call.1} parent=35 // pred_check_branch
          %255 = sbr.rel (%p253) target = $region44
        $region43: #{tpu_custom_call.1} parent=35 // pred_region
          %256 = dma.done [#allocation10], 1024
        $region44: #{tpu_custom_call.1} parent=35 // pred_fallthru
          _
        %s257 = sand.u32 %s49, 1
        %s258 = scalar_lea.sflag [#allocation7], %s257
        %s259 = sand.u32 %s49, 1
        %s260 = smul.addr %s259, 64
        %s261 = scalar_lea.vmem [#allocation6], %s260
        %p262 = pneg %p62
        %p263 = pneg %p59
        %p264 = pneg %p88
        %p265 = pneg %p85
        %p266 = scmp.lt.s32.totalorder %s27, 0
        %s267 = scalar_select %p266, %s27, 0
        %s268 = scalar_lea.vmem %s2, %s267
        %p269 = pneg %p114
        %p270 = pneg %p111
        %p271 = scmp.lt.s32.totalorder %s27, 0
        %s272 = scalar_select %p271, %s27, 0
        %s273 = scalar_lea.vmem %s3, %s272
        %p274 = pneg %p140
        %p275 = pneg %p137
        %p276 = pneg %p170
        %p277 = pneg %p167
        %s278 = sand.u32 %s157, 1
        %s279 = scalar_lea.sflag [#allocation8], %s278
        %s280 = sand.u32 %s157, 1
        %s281 = smul.addr %s280, 128
        %s282 = scalar_lea.vmem [#allocation11], %s281
        %s283 = smul.u32 16, %s29
        %p284 = scmp.lt.s32.totalorder %s27, 0
        %s285 = scalar_select %p284, %s27, 0
        %s286 = scalar_lea.vmem %s2, %s285
        %p287 = scmp.lt.s32.totalorder %s27, 0
        %s288 = scalar_select %p287, %s27, 0
        %s289 = scalar_lea.vmem %s3, %s288
        %s290 = smul.u32 %s28, %s29
        %s291 = smul.u32 16, %s290
        %v293 = vld [vmem:[%s248] sm:$0xf]
        %v294 = vld [vmem:[%s248 + $0x4] sm:$0xf]
        %v295 = vld [vmem:[%s248 + $0x8] sm:$0xf]
        %v296 = vld [vmem:[%s248 + $0xc] sm:$0xf]
        %v297 = vld [vmem:[%s248 + $0x10] sm:$0xf]
        %v298 = vld [vmem:[%s248 + $0x14] sm:$0xf]
        %v299 = vld [vmem:[%s248 + $0x18] sm:$0xf]
        %v300 = vld [vmem:[%s248 + $0x1c] sm:$0xf]
        %v301 = vld [vmem:[%s248 + $0x20] sm:$0xf]
        %v302 = vld [vmem:[%s248 + $0x24] sm:$0xf]
        %v303 = vld [vmem:[%s248 + $0x28] sm:$0xf]
        %v304 = vld [vmem:[%s248 + $0x2c] sm:$0xf]
        %v305 = vld [vmem:[%s248 + $0x30] sm:$0xf]
        %v306 = vld [vmem:[%s248 + $0x34] sm:$0xf]
        %v307 = vld [vmem:[%s248 + $0x38] sm:$0xf]
        %v308 = vld [vmem:[%s248 + $0x3c] sm:$0xf]
        %v309 = vld [vmem:[#allocation9] sm:$0xf]
        %v310 = vld [vmem:[#allocation9 + $0x4] sm:$0xf]
        %v311 = vld [vmem:[#allocation9 + $0x8] sm:$0xf]
        %v312 = vld [vmem:[#allocation9 + $0xc] sm:$0xf]
        %v313 = vld [vmem:[#allocation9 + $0x10] sm:$0xf]
        %v314 = vld [vmem:[#allocation9 + $0x14] sm:$0xf]
        %v315 = vld [vmem:[#allocation9 + $0x18] sm:$0xf]
        %v316 = vld [vmem:[#allocation9 + $0x1c] sm:$0xf]
        %v317 = vld [vmem:[#allocation9 + $0x20] sm:$0xf]
        %v318 = vld [vmem:[#allocation9 + $0x24] sm:$0xf]
        %v319 = vld [vmem:[#allocation9 + $0x28] sm:$0xf]
        %v320 = vld [vmem:[#allocation9 + $0x2c] sm:$0xf]
        %v321 = vld [vmem:[#allocation9 + $0x30] sm:$0xf]
        %v322 = vld [vmem:[#allocation9 + $0x34] sm:$0xf]
        %v323 = vld [vmem:[#allocation9 + $0x38] sm:$0xf]
        %v324 = vld [vmem:[#allocation9 + $0x3c] sm:$0xf]
        %v341 = vunpack.c.l.b16 %v293
        %v342 = vunpack.c.l.b16 %v294
        %v343 = vunpack.c.l.b16 %v295
        %v344 = vunpack.c.l.b16 %v296
        %v345 = vunpack.c.l.b16 %v297
        %v346 = vunpack.c.l.b16 %v298
        %v347 = vunpack.c.l.b16 %v299
        %v348 = vunpack.c.l.b16 %v300
        %v349 = vunpack.c.l.b16 %v301
        %v350 = vunpack.c.l.b16 %v302
        %v351 = vunpack.c.l.b16 %v303
        %v352 = vunpack.c.l.b16 %v304
        %v353 = vunpack.c.l.b16 %v305
        %v354 = vunpack.c.l.b16 %v306
        %v355 = vunpack.c.l.b16 %v307
        %v356 = vunpack.c.l.b16 %v308
        %v357 = vpack.c.b16 %v342, %v341
        %v358 = vpack.c.b16 %v344, %v343
        %v359 = vpack.c.b16 %v346, %v345
        %v360 = vpack.c.b16 %v348, %v347
        %v361 = vpack.c.b16 %v350, %v349
        %v362 = vpack.c.b16 %v352, %v351
        %v363 = vpack.c.b16 %v354, %v353
        %v364 = vpack.c.b16 %v356, %v355
        %v389 = vunpack.c.l.b16 %v309
        %v390 = vunpack.c.l.b16 %v310
        %v391 = vunpack.c.l.b16 %v311
        %v392 = vunpack.c.l.b16 %v312
        %v393 = vunpack.c.l.b16 %v313
        %v394 = vunpack.c.l.b16 %v314
        %v395 = vunpack.c.l.b16 %v315
        %v396 = vunpack.c.l.b16 %v316
        %v397 = vunpack.c.l.b16 %v317
        %v398 = vunpack.c.l.b16 %v318
        %v399 = vunpack.c.l.b16 %v319
        %v400 = vunpack.c.l.b16 %v320
        %v401 = vunpack.c.l.b16 %v321
        %v402 = vunpack.c.l.b16 %v322
        %v403 = vunpack.c.l.b16 %v323
        %v404 = vunpack.c.l.b16 %v324
        %v405 = vpack.c.b16 %v390, %v389
        %v406 = vpack.c.b16 %v392, %v391
        %v407 = vpack.c.b16 %v394, %v393
        %v408 = vpack.c.b16 %v396, %v395
        %v409 = vpack.c.b16 %v398, %v397
        %v410 = vpack.c.b16 %v400, %v399
        %v411 = vpack.c.b16 %v402, %v401
        %v412 = vpack.c.b16 %v404, %v403
        %421 = vmatprep.subr.bf16.mxu0 0
        %422 = vmatpush1.bf16.msra.mxu0 %v405
        %423 = vmatprep.subr.bf16.mxu0 0
        %424 = vmatpush1.bf16.msra.mxu0 %v406
        %425 = vmatprep.subr.bf16.mxu0 0
        %426 = vmatpush1.bf16.msra.mxu0 %v407
        %427 = vmatprep.subr.bf16.mxu0 0
        %428 = vmatpush1.bf16.msra.mxu0 %v408
        %429 = vmatprep.subr.bf16.mxu0 0
        %430 = vmatpush1.bf16.msra.mxu0 %v409
        %431 = vmatprep.subr.bf16.mxu0 0
        %432 = vmatpush1.bf16.msra.mxu0 %v410
        %433 = vmatprep.subr.bf16.mxu0 0
        %434 = vmatpush1.bf16.msra.mxu0 %v411
        %435 = vmatprep.subr.bf16.mxu0 0
        %436 = vmatpush1.bf16.msra.mxu0 %v412
        %437 = vmatprep.subr.bf16.mxu0 0
        %438 = vmatpush1.bf16.msra.mxu0 0
        %439 = vmatprep.subr.bf16.mxu0 0
        %440 = vmatpush1.bf16.msra.mxu0 0
        %441 = vmatprep.subr.bf16.mxu0 0
        %442 = vmatpush1.bf16.msra.mxu0 0
        %443 = vmatprep.subr.bf16.mxu0 0
        %444 = vmatpush1.bf16.msra.mxu0 0
        %445 = vmatprep.subr.bf16.mxu0 0
        %446 = vmatpush1.bf16.msra.mxu0 0
        %447 = vmatprep.subr.bf16.mxu0 0
        %448 = vmatpush1.bf16.msra.mxu0 0
        %449 = vmatprep.subr.bf16.mxu0 0
        %450 = vmatpush1.bf16.msra.mxu0 0
        %451 = vmatprep.subr.bf16.mxu0 0
        %452 = vmatpush1.bf16.msra.mxu0 0
        %453 = vmatprep.mubr.bf16.mxu0 0
        %454 = vmatmul.mubr.bf16.gmra.mrb[0].mxu0 %v357
        %v455 = vpop.f32.mrb[0].mxu0
        %v456 = vadd.f32 0.0, %v455
        %v457 = vpop.f32.mrb[0].mxu0
        %v458 = vpop.f32.mrb[0].mxu0
        %v459 = vadd.f32 0.0, %v458
        %v460 = vpop.f32.mrb[0].mxu0
        %461 = vmatprep.mubr.bf16.mxu0 0
        %462 = vmatmul.mubr.bf16.gmra.mrb[0].mxu0 %v358
        %v463 = vpop.f32.mrb[0].mxu0
        %v464 = vadd.f32 0.0, %v463
        %v465 = vpop.f32.mrb[0].mxu0
        %v466 = vpop.f32.mrb[0].mxu0
        %v467 = vadd.f32 0.0, %v466
        %v468 = vpop.f32.mrb[0].mxu0
        %469 = vmatprep.mubr.bf16.mxu0 0
        %470 = vmatmul.mubr.bf16.gmra.mrb[0].mxu0 %v359
        %v471 = vpop.f32.mrb[0].mxu0
        %v472 = vadd.f32 0.0, %v471
        %v473 = vpop.f32.mrb[0].mxu0
        %v474 = vpop.f32.mrb[0].mxu0
        %v475 = vadd.f32 0.0, %v474
        %v476 = vpop.f32.mrb[0].mxu0
        %477 = vmatprep.mubr.bf16.mxu0 0
        %478 = vmatmul.mubr.bf16.gmra.mrb[0].mxu0 %v360
        %v479 = vpop.f32.mrb[0].mxu0
        %v480 = vadd.f32 0.0, %v479
        %v481 = vpop.f32.mrb[0].mxu0
        %v482 = vpop.f32.mrb[0].mxu0
        %v483 = vadd.f32 0.0, %v482
        %v484 = vpop.f32.mrb[0].mxu0
        %485 = vmatprep.mubr.bf16.mxu0 0
        %486 = vmatmul.mubr.bf16.gmra.mrb[0].mxu0 %v361
        %v487 = vpop.f32.mrb[0].mxu0
        %v488 = vadd.f32 0.0, %v487
        %v489 = vpop.f32.mrb[0].mxu0
        %v490 = vpop.f32.mrb[0].mxu0
        %v491 = vadd.f32 0.0, %v490
        %v492 = vpop.f32.mrb[0].mxu0
        %493 = vmatprep.mubr.bf16.mxu0 0
        %494 = vmatmul.mubr.bf16.gmra.mrb[0].mxu0 %v362
        %v495 = vpop.f32.mrb[0].mxu0
        %v496 = vadd.f32 0.0, %v495
        %v497 = vpop.f32.mrb[0].mxu0
        %v498 = vpop.f32.mrb[0].mxu0
        %v499 = vadd.f32 0.0, %v498
        %v500 = vpop.f32.mrb[0].mxu0
        %501 = vmatprep.mubr.bf16.mxu0 0
        %502 = vmatmul.mubr.bf16.gmra.mrb[0].mxu0 %v363
        %v503 = vpop.f32.mrb[0].mxu0
        %v504 = vadd.f32 0.0, %v503
        %v505 = vpop.f32.mrb[0].mxu0
        %v506 = vpop.f32.mrb[0].mxu0
        %v507 = vadd.f32 0.0, %v506
        %v508 = vpop.f32.mrb[0].mxu0
        %509 = vmatprep.mubr.bf16.mxu0 0
        %510 = vmatmul.mubr.bf16.gmra.mrb[0].mxu0 %v364
        %v511 = vpop.f32.mrb[0].mxu0
        %v512 = vadd.f32 0.0, %v511
        %v513 = vpop.f32.mrb[0].mxu0
        %v514 = vpop.f32.mrb[0].mxu0
        %v515 = vadd.f32 0.0, %v514
        %v516 = vpop.f32.mrb[0].mxu0
        %517 = vdwg.mxu0
        %p518 = scmp.eq.s32.totalorder %s28, 0
        // Predicated region
        $region45: #{tpu_custom_call.1} parent=35 // pred_check
          %p519 = pneg %p518
        $region46: #{tpu_custom_call.1} parent=35 // pred_check_branch
          %521 = sbr.rel (%p519) target = $region48
        $region47: #{tpu_custom_call.1} parent=35 // pred_region
          %p522 = scmp.eq.s32.totalorder %s29, 0
          // Predicated region
          $region49: #{tpu_custom_call.1} parent=47 // pred_check
            %p523 = pneg %p522
          $region50: #{tpu_custom_call.1} parent=47 // pred_check_branch
            %525 = sbr.rel (%p523) target = $region52
          $region51: #{tpu_custom_call.1} parent=47 // pred_region
            %526 = vst [vmem:[#allocation2] sm:$0x1] 0.0
            %527 = vst [vmem:[#allocation3] sm:$0x1] 0.0
          $region52: #{tpu_custom_call.1} parent=47 // pred_fallthru
            _
          %v528 = vld [vmem:[#allocation2] sm:$0x1]
          %v529 = vadd.f32 %v456, %v459
          %v530 = vadd.f32 %v529, %v464
          %v531 = vadd.f32 %v530, %v467
          %v532 = vadd.f32 %v531, %v472
          %v533 = vadd.f32 %v532, %v475
          %v534 = vadd.f32 %v533, %v480
          %v535 = vadd.f32 %v534, %v483
          %v536 = vadd.f32 %v535, %v488
          %v537 = vadd.f32 %v536, %v491
          %v538 = vadd.f32 %v537, %v496
          %v539 = vadd.f32 %v538, %v499
          %v540 = vadd.f32 %v539, %v504
          %v541 = vadd.f32 %v540, %v507
          %v542 = vadd.f32 %v541, %v512
          %v543 = vadd.f32 %v542, %v515
          %v544 = vrot.slane %v543, 4
          %v545 = vadd.f32 %v543, %v544
          %v546 = vrot.slane %v545, 2
          %v547 = vadd.f32 %v545, %v546
          %v548 = vrot.slane %v547, 1
          %v549 = vadd.f32 %v547, %v548
          %v550 = vadd.f32 %v528, %v549
          %551 = vst [vmem:[#allocation2] sm:$0x1] %v550
          %v552 = vld [vmem:[#allocation3] sm:$0x1]
          %v553 = vmul.f32 %v456, %v456
          %v554 = vmul.f32 %v459, %v459
          %v555 = vmul.f32 %v464, %v464
          %v556 = vmul.f32 %v467, %v467
          %v557 = vmul.f32 %v472, %v472
          %v558 = vmul.f32 %v475, %v475
          %v559 = vmul.f32 %v480, %v480
          %v560 = vmul.f32 %v483, %v483
          %v561 = vmul.f32 %v488, %v488
          %v562 = vmul.f32 %v491, %v491
          %v563 = vmul.f32 %v496, %v496
          %v564 = vmul.f32 %v499, %v499
          %v565 = vmul.f32 %v504, %v504
          %v566 = vmul.f32 %v507, %v507
          %v567 = vmul.f32 %v512, %v512
          %v568 = vmul.f32 %v515, %v515
          %v569 = vadd.f32 %v553, %v554
          %v570 = vadd.f32 %v569, %v555
          %v571 = vadd.f32 %v570, %v556
          %v572 = vadd.f32 %v571, %v557
          %v573 = vadd.f32 %v572, %v558
          %v574 = vadd.f32 %v573, %v559
          %v575 = vadd.f32 %v574, %v560
          %v576 = vadd.f32 %v575, %v561
          %v577 = vadd.f32 %v576, %v562
          %v578 = vadd.f32 %v577, %v563
          %v579 = vadd.f32 %v578, %v564
          %v580 = vadd.f32 %v579, %v565
          %v581 = vadd.f32 %v580, %v566
          %v582 = vadd.f32 %v581, %v567
          %v583 = vadd.f32 %v582, %v568
          %v584 = vrot.slane %v583, 4
          %v585 = vadd.f32 %v583, %v584
          %v586 = vrot.slane %v585, 2
          %v587 = vadd.f32 %v585, %v586
          %v588 = vrot.slane %v587, 1
          %v589 = vadd.f32 %v587, %v588
          %v590 = vadd.f32 %v552, %v589
          %591 = vst [vmem:[#allocation3] sm:$0x1] %v590
          %p592 = scmp.eq.s32.totalorder %s29, 3
          // Predicated region
          $region53: #{tpu_custom_call.1} parent=47 // pred_check
            %p593 = pneg %p592
          $region54: #{tpu_custom_call.1} parent=47 // pred_check_branch
            %595 = sbr.rel (%p593) target = $region56
          $region55: #{tpu_custom_call.1} parent=47 // pred_region
            %v596 = vld [vmem:[#allocation2] sm:$0x1]
            %v597 = vmul.f32 %v596, 0.001953125
            %v598 = vld [vmem:[#allocation3] sm:$0x1]
            %v599 = vmul.f32 %v598, 0.001953125
            %v600 = vmul.f32 %v597, %v597
            %v601 = vsub.f32 %v599, %v600
            %v602 = vmax.f32 %v601, 0.0
            %v603 = vadd.f32 %v602, 1e-05
            %v604 = vrsqrt.pop %v603
            %v605 = vld [vmem:[%s286] sm:$0x1]
            %v606 = vmul.f32 %v605, %v604
            %607 = vst [vmem:[#allocation4] sm:$0x1] %v606
            %v608 = vld [vmem:[%s289] sm:$0x1]
            %v609 = vmul.f32 %v597, %v606
            %v610 = vsub.f32 %v608, %v609
            %611 = vst [vmem:[#allocation5] sm:$0x1] %v610
          $region56: #{tpu_custom_call.1} parent=47 // pred_fallthru
            _
        $region48: #{tpu_custom_call.1} parent=35 // pred_fallthru
          _
        %p612 = scmp.eq.s32.totalorder %s28, 1
        // Predicated region
        $region57: #{tpu_custom_call.1} parent=35 // pred_check
          %p613 = pneg %p612
        $region58: #{tpu_custom_call.1} parent=35 // pred_check_branch
          %615 = sbr.rel (%p613) target = $region60
        $region59: #{tpu_custom_call.1} parent=35 // pred_region
          %v616 = vld [vmem:[#allocation4] sm:$0x1]
          %v618 = vlaneseq
          %v619 = vshrl.u32 %v618, 7
          %v620 = vsub.s32 0, %v619
          %v621 = vrot.slane %v616, %v620
          %v623 = vmul.f32 %v456, %v621
          %v624 = vmul.f32 %v459, %v621
          %v625 = vmul.f32 %v464, %v621
          %v626 = vmul.f32 %v467, %v621
          %v627 = vmul.f32 %v472, %v621
          %v628 = vmul.f32 %v475, %v621
          %v629 = vmul.f32 %v480, %v621
          %v630 = vmul.f32 %v483, %v621
          %v631 = vmul.f32 %v488, %v621
          %v632 = vmul.f32 %v491, %v621
          %v633 = vmul.f32 %v496, %v621
          %v634 = vmul.f32 %v499, %v621
          %v635 = vmul.f32 %v504, %v621
          %v636 = vmul.f32 %v507, %v621
          %v637 = vmul.f32 %v512, %v621
          %v638 = vmul.f32 %v515, %v621
          %v639 = vld [vmem:[#allocation5] sm:$0x1]
          %v641 = vlaneseq
          %v642 = vshrl.u32 %v641, 7
          %v643 = vsub.s32 0, %v642
          %v644 = vrot.slane %v639, %v643
          %v646 = vadd.f32 %v623, %v644
          %v647 = vadd.f32 %v624, %v644
          %v648 = vadd.f32 %v625, %v644
          %v649 = vadd.f32 %v626, %v644
          %v650 = vadd.f32 %v627, %v644
          %v651 = vadd.f32 %v628, %v644
          %v652 = vadd.f32 %v629, %v644
          %v653 = vadd.f32 %v630, %v644
          %v654 = vadd.f32 %v631, %v644
          %v655 = vadd.f32 %v632, %v644
          %v656 = vadd.f32 %v633, %v644
          %v657 = vadd.f32 %v634, %v644
          %v658 = vadd.f32 %v635, %v644
          %v659 = vadd.f32 %v636, %v644
          %v660 = vadd.f32 %v637, %v644
          %v661 = vadd.f32 %v638, %v644
          %v662 = vmax.f32 %v646, 0.0
          %v663 = vmax.f32 %v647, 0.0
          %v664 = vmax.f32 %v648, 0.0
          %v665 = vmax.f32 %v649, 0.0
          %v666 = vmax.f32 %v650, 0.0
          %v667 = vmax.f32 %v651, 0.0
          %v668 = vmax.f32 %v652, 0.0
          %v669 = vmax.f32 %v653, 0.0
          %v670 = vmax.f32 %v654, 0.0
          %v671 = vmax.f32 %v655, 0.0
          %v672 = vmax.f32 %v656, 0.0
          %v673 = vmax.f32 %v657, 0.0
          %v674 = vmax.f32 %v658, 0.0
          %v675 = vmax.f32 %v659, 0.0
          %v676 = vmax.f32 %v660, 0.0
          %v677 = vmax.f32 %v661, 0.0
          %678 = vst [vmem:[%s282] sm:$0xff] %v662
          %679 = vst [vmem:[%s282 + $0x8] sm:$0xff] %v663
          %680 = vst [vmem:[%s282 + $0x10] sm:$0xff] %v664
          %681 = vst [vmem:[%s282 + $0x18] sm:$0xff] %v665
          %682 = vst [vmem:[%s282 + $0x20] sm:$0xff] %v666
          %683 = vst [vmem:[%s282 + $0x28] sm:$0xff] %v667
          %684 = vst [vmem:[%s282 + $0x30] sm:$0xff] %v668
          %685 = vst [vmem:[%s282 + $0x38] sm:$0xff] %v669
          %686 = vst [vmem:[%s282 + $0x40] sm:$0xff] %v670
          %687 = vst [vmem:[%s282 + $0x48] sm:$0xff] %v671
          %688 = vst [vmem:[%s282 + $0x50] sm:$0xff] %v672
          %689 = vst [vmem:[%s282 + $0x58] sm:$0xff] %v673
          %690 = vst [vmem:[%s282 + $0x60] sm:$0xff] %v674
          %691 = vst [vmem:[%s282 + $0x68] sm:$0xff] %v675
          %692 = vst [vmem:[%s282 + $0x70] sm:$0xff] %v676
          %693 = vst [vmem:[%s282 + $0x78] sm:$0xff] %v677
        $region60: #{tpu_custom_call.1} parent=35 // pred_fallthru
          _
        %s694 = sand.u32 %s157, 1
        %s695 = scalar_lea.sflag [#allocation8], %s694
        %s696 = sand.u32 %s157, 1
        %s697 = smul.addr %s696, 128
        %s698 = scalar_lea.vmem [#allocation11], %s697
        // Predicated region
        $region61: #{tpu_custom_call.1} parent=35 // pred_check
          %p699 = pneg %p167
        $region62: #{tpu_custom_call.1} parent=35 // pred_check_branch
          %701 = sbr.rel (%p699) target = $region64
        $region63: #{tpu_custom_call.1} parent=35 // pred_region
          %s702 = smul.u32 %s28, %s29
          %s703 = smul.u32 16, %s702
          %s705 = ssub.s32 2048, 2048
          %706 = vsyncadd %s695, %s705
          %s707 = sadd.s32 %s27, %s703
          %s708 = smul.addr %s707, 128
          %s709 = scalar_lea.hbm %s4, %s708
          %s710 = sshll.u32 %s698, 4
          %s711 = int_to_ptr.vmem [resolvable:$true] %s710
          %716 = dma.vmem_to_hbm [thread:$0]  %s711, 2048, %s709, %s695, 128, 128, 8
        $region64: #{tpu_custom_call.1} parent=35 // pred_fallthru
          _
      $region36: #{tpu_custom_call.1} parent=5 // pred_fallthru
        _
      %p717 = scmp.le.s32.totalorder 2, %s17
      // Predicated region
      $region65: #{tpu_custom_call.1} parent=5 // pred_check
        %p718 = pneg %p717
      $region66: #{tpu_custom_call.1} parent=5 // pred_check_branch
        %720 = sbr.rel (%p718) target = $region68
      $region67: #{tpu_custom_call.1} parent=5 // pred_region
        %s721 = ssub.s32 %s17, 2
        // Predicated region
        $region69: #{tpu_custom_call.1} parent=67 // pred_check
          %p722 = pneg %p173
        $region70: #{tpu_custom_call.1} parent=67 // pred_check_branch
          %724 = sbr.rel (%p722) target = $region72
        $region71: #{tpu_custom_call.1} parent=67 // pred_region
          %s725 = sand.u32 %s158, 1
          %s726 = scalar_lea.sflag [#allocation8], %s725
          %s727 = sand.u32 %s158, 1
          %s728 = smul.addr %s727, 128
          %s729 = scalar_lea.vmem [#allocation11], %s728
          %730 = dma.done %s726, 2048
        $region72: #{tpu_custom_call.1} parent=67 // pred_fallthru
          _
      $region68: #{tpu_custom_call.1} parent=5 // pred_fallthru
        _
    $region6: #{tpu_custom_call.1} parent=1 // loop_footer
      %s21 = sadd.s32 1, %s17
    $region7: #{tpu_custom_call.1} parent=1 // loop_footer_branch
      %16 = sbr.rel target = $region3
    $region8: #{tpu_custom_call.1} parent=1 // loop_exit
      _
    %731 = vsyncpa [#allocation7], 1
    %s732 = scalar_lea.sflag [#allocation7], 1
    %733 = vsyncpa %s732, 1
    %734 = vsyncpa [#allocation10], 1
    %735 = vsyncpa [#allocation8], 1
    %s736 = scalar_lea.sflag [#allocation8], 1
    %737 = vsyncpa %s736, 1

</llo_original>
